<compile_context>
chip_gen: v6e
topology: v6e:2x2x1
jax: 0.10.0
libtpu: 0.0.40
codegen_flags: <defaults>
</compile_context>

<pallas_src>
import functools

import jax
import jax.numpy as jnp
from jax import lax
from jax.experimental import pallas as pl
from jax.experimental.pallas import tpu as pltpu

_LANES = 128


def _cdiv(a, b):
    return -(-a // b)


def _lstm_last_hidden_kernel(x_ref, w_ref, b_ref, out_ref):
    """One grid step: LSTM final hidden state for a block of sequences.

    Transposed (feature-on-sublane / sequence-on-lane) layout:
      x_ref  : (S, E, bn)   time-major inputs, compute dtype (e.g. bf16)
      w_ref  : (4H, E+H)    fused [W_ih | W_hh], compute dtype
      b_ref  : (4H, 128)    b_ih + b_hh, pre-broadcast along lanes, float32
      out_ref: (H, bn)      final hidden state h_T, one sequence per lane
    """
    S, E, bn = x_ref.shape
    four_h = w_ref.shape[0]
    H = four_h // 4
    nchunks = bn // _LANES

    def chunk_body(j, carry):
        col = pl.multiple_of(j * _LANES, _LANES)
        w = w_ref[...]        # (4H, E+H) resident weights
        bias = b_ref[...]     # (4H, 128) f32, no in-kernel broadcast needed
        h = jnp.zeros((H, _LANES), jnp.float32)
        c = jnp.zeros((H, _LANES), jnp.float32)
        for t in range(S):    # S is small & static -> fully unrolled
            xt = x_ref[t, :, pl.ds(col, _LANES)]                   # (E, 128)
            xh = jnp.concatenate([xt, h.astype(w.dtype)], axis=0)  # (E+H, 128)
            g = jnp.dot(w, xh, preferred_element_type=jnp.float32) + bias
            # PyTorch gate order: input, forget, cell(g), output.
            # Sublane slices at 32-row boundaries: zero-cost vreg selects.
            i_g = jax.nn.sigmoid(g[0 * H:1 * H, :])
            f_g = jax.nn.sigmoid(g[1 * H:2 * H, :])
            g_g = jnp.tanh(g[2 * H:3 * H, :])
            o_g = jax.nn.sigmoid(g[3 * H:4 * H, :])
            c = f_g * c + i_g * g_g
            h = o_g * jnp.tanh(c)
        # Lane-dense, 128-lane-aligned store (unmasked vst).
        out_ref[:, pl.ds(col, _LANES)] = h.astype(out_ref.dtype)
        return carry

    # Rolled chunk loop bounds vreg pressure to one 128-lane chunk at a time.
    lax.fori_loop(0, nchunks, chunk_body, 0)


@functools.partial(jax.jit,
                   static_argnames=("block_n", "compute_dtype", "out_dtype"))
def time_distributed_lstm(x, w_ih, w_hh, b_ih, b_hh, *, block_n=512,
                          compute_dtype=jnp.bfloat16, out_dtype=jnp.float32):
    """x: (B, T, S, E) float32; returns (B, T, H) out_dtype (H must equal E)."""
    B, T, S, E = x.shape
    four_h = w_ih.shape[0]
    H = w_hh.shape[1]
    assert four_h == 4 * H
    assert H == E, "module writes hidden into an embed_dim-wide output buffer"

    N = B * T
    total_cols = _cdiv(N, _LANES)                 # 128-lane columns of work
    block_cols = max(1, min(max(block_n // _LANES, 1), total_cols))
    grid_n = _cdiv(total_cols, block_cols)
    # v7x: if we'd land on a single grid step but there is >1 column of work,
    # split it so dimension_semantics=("parallel",) feeds both TensorCores.
    if grid_n == 1 and total_cols >= 2:
        block_cols = _cdiv(total_cols, 2)
        grid_n = _cdiv(total_cols, block_cols)
    bn = block_cols * _LANES
    N_pad = grid_n * bn

    # Cast to the matmul/storage dtype BEFORE the relayout (halves the bytes
    # moved), then go to the lane-dense (S, E, N) layout; pad N only if needed.
    xh = x.reshape(N, S, E).astype(compute_dtype)
    xf = jnp.transpose(xh, (1, 2, 0))             # (S, E, N)
    if N_pad != N:
        xf = jnp.pad(xf, ((0, 0), (0, 0), (0, N_pad - N)))

    # PyTorch weights are already (4H, K): fuse [W_ih | W_hh] -> (4H, E+H) so
    # the recurrence is one matmul per step on the concatenated [x_t; h].
    w_fused = jnp.concatenate([w_ih, w_hh], axis=1).astype(compute_dtype)
    bias = jnp.broadcast_to((b_ih + b_hh).astype(jnp.float32)[:, None],
                            (4 * H, _LANES))

    out = pl.pallas_call(
        _lstm_last_hidden_kernel,
        out_shape=jax.ShapeDtypeStruct((H, N_pad), out_dtype),
        grid_spec=pltpu.PrefetchScalarGridSpec(
            num_scalar_prefetch=0,
            grid=(grid_n,),
            in_specs=[
                pl.BlockSpec((S, E, bn), lambda n: (0, 0, n)),
                pl.BlockSpec((4 * H, E + H), lambda n: (0, 0)),
                pl.BlockSpec((4 * H, _LANES), lambda n: (0, 0)),
            ],
            out_specs=pl.BlockSpec((H, bn), lambda n: (0, n)),
        ),
        compiler_params=pltpu.CompilerParams(
            dimension_semantics=("parallel",),    # shard grid across TCs
        ),
    )(xf, w_fused, bias)

    # TODO(synk): nn.Dropout on hidden_t is identity in eval mode; training-mode
    # stochastic dropout is intentionally omitted.

    # (H, N_pad) -> (B, T, H); trailing transpose of a small (H, N) slab.
    return jnp.transpose(out[:, :N]).reshape(B, T, H)


def _lstm_last_hidden_ref(xf, w_ih, w_hh, b_ih, b_hh, *,
                          compute_dtype=jnp.float32):
    """Pure-JAX reference mimicking the kernel's numerics.

    xf: (N, S, E); returns (N, H).  Matmul operands cast to compute_dtype (as
    the kernel does); accumulation and gate math stay float32.
    """
    N, S, E = xf.shape
    H = w_hh.shape[1]
    wih_t = w_ih.T.astype(compute_dtype)
    whh_t = w_hh.T.astype(compute_dtype)
    bias = (b_ih + b_hh).astype(jnp.float32)
    h = jnp.zeros((N, H), jnp.float32)
    c = jnp.zeros((N, H), jnp.float32)
    for t in range(S):
        xt = xf[:, t, :].astype(compute_dtype)
        gates = (
            jnp.dot(xt, wih_t, preferred_element_type=jnp.float32)
            + jnp.dot(h.astype(compute_dtype), whh_t,
                      preferred_element_type=jnp.float32)
            + bias
        )
        i_g = jax.nn.sigmoid(gates[:, 0 * H:1 * H])
        f_g = jax.nn.sigmoid(gates[:, 1 * H:2 * H])
        g_g = jnp.tanh(gates[:, 2 * H:3 * H])
        o_g = jax.nn.sigmoid(gates[:, 3 * H:4 * H])
        c = f_g * c + i_g * g_g
        h = o_g * jnp.tanh(c)
    return h


if __name__ == "__main__":
    # Shapes consistent with the module's forward: batch=2, time_steps=8,
    # inner sequence length=5, input_dim = embed_dim = output_dim = 32.
    B, T, S, E = 2, 8, 5, 32
    H = E

    key = jax.random.PRNGKey(0)
    kx, k1, k2, k3, k4, kx2, kx3 = jax.random.split(key, 7)

    x = jax.random.normal(kx, (B, T, S, E), jnp.float32)

    # PyTorch-LSTM-like init: U(-1/sqrt(H), 1/sqrt(H)).
    bound = 1.0 / jnp.sqrt(jnp.float32(H))
    w_ih = jax.random.uniform(k1, (4 * H, E), jnp.float32, -bound, bound)
    w_hh = jax.random.uniform(k2, (4 * H, H), jnp.float32, -bound, bound)
    b_ih = jax.random.uniform(k3, (4 * H,), jnp.float32, -bound, bound)
    b_hh = jax.random.uniform(k4, (4 * H,), jnp.float32, -bound, bound)

    out = jax.block_until_ready(time_distributed_lstm(x, w_ih, w_hh, b_ih, b_hh))
    assert out.shape == (B, T, H)
    ref = _lstm_last_hidden_ref(
        x.reshape(B * T, S, E), w_ih, w_hh, b_ih, b_hh,
        compute_dtype=jnp.bfloat16).reshape(B, T, H)
    err = float(jnp.max(jnp.abs(out - ref)))
    assert jnp.allclose(out, ref, atol=1e-2, rtol=1e-2), err

    # Config 2: N = 21 (not a multiple of 128) -> exercises the padding path.
    B2, T2 = 3, 7
    x2 = jax.random.normal(kx2, (B2, T2, S, E), jnp.float32)
    out2 = jax.block_until_ready(
        time_distributed_lstm(x2, w_ih, w_hh, b_ih, b_hh))
    ref2 = _lstm_last_hidden_ref(
        x2.reshape(B2 * T2, S, E), w_ih, w_hh, b_ih, b_hh,
        compute_dtype=jnp.bfloat16).reshape(B2, T2, H)
    err2 = float(jnp.max(jnp.abs(out2 - ref2)))
    assert jnp.allclose(out2, ref2, atol=1e-2, rtol=1e-2), err2

    # Config 3: N = 320 -> multi-column block (internal chunk loop) + grid of 2.
    B3, T3 = 5, 64
    x3 = jax.random.normal(kx3, (B3, T3, S, E), jnp.float32)
    out3 = jax.block_until_ready(
        time_distributed_lstm(x3, w_ih, w_hh, b_ih, b_hh))
    ref3 = _lstm_last_hidden_ref(
        x3.reshape(B3 * T3, S, E), w_ih, w_hh, b_ih, b_hh,
        compute_dtype=jnp.bfloat16).reshape(B3, T3, H)
    err3 = float(jnp.max(jnp.abs(out3 - ref3)))
    assert jnp.allclose(out3, ref3, atol=1e-2, rtol=1e-2), err3

    print("KERNEL_OK")
</pallas_src>

<mosaic_0001>
module attributes {stable_mosaic.version = 11 : i64} {
  func.func @_lstm_last_hidden_kernel(%arg0: i32, %arg1: memref<5x32x128xbf16, #tpu.memory_space<vmem>>, %arg2: memref<128x64xbf16, #tpu.memory_space<vmem>>, %arg3: memref<128x128xf32, #tpu.memory_space<vmem>>, %arg4: memref<32x128xf32, #tpu.memory_space<vmem>>) attributes {dimension_semantics = [#tpu.dimension_semantics<parallel>], iteration_bounds = array<i64: 1>, scalar_prefetch = 0 : i64, scratch_operands = 0 : i64, tpu.core_type = #tpu.core_type<tc>, window_params = [{transform_indices = @transform_0, window_bounds = array<i64: 5, 32, 128>}, {pipeline_mode = #tpu.pipeline_mode<synchronous>, transform_indices = @transform_1, window_bounds = array<i64: 128, 64>}, {pipeline_mode = #tpu.pipeline_mode<synchronous>, transform_indices = @transform_2, window_bounds = array<i64: 128, 128>}, {transform_indices = @transform_3, window_bounds = array<i64: 32, 128>}]} {
    %c0_i32 = arith.constant 0 : i32
    %c128_i32 = arith.constant 128 : i32
    %0 = arith.muli %c0_i32, %c128_i32 : i32
    %1 = tpu.assume_multiple %0, 128 : i32
    %c0 = arith.constant 0 : index
    %c0_0 = arith.constant 0 : index
    %2 = vector.load %arg2[%c0, %c0_0] : memref<128x64xbf16, #tpu.memory_space<vmem>>, vector<128x64xbf16>
    %c0_1 = arith.constant 0 : index
    %c0_2 = arith.constant 0 : index
    %3 = vector.load %arg3[%c0_1, %c0_2] : memref<128x128xf32, #tpu.memory_space<vmem>>, vector<128x128xf32>
    %cst = arith.constant 0.000000e+00 : f32
    %4 = vector.broadcast %cst : f32 to vector<32x128xf32>
    %cst_3 = arith.constant 0.000000e+00 : f32
    %5 = vector.broadcast %cst_3 : f32 to vector<32x128xf32>
    %c0_4 = arith.constant 0 : index
    %c0_5 = arith.constant 0 : index
    %6 = arith.index_cast %1 : i32 to index
    %7 = vector.load %arg1[%c0_4, %c0_5, %6] : memref<5x32x128xbf16, #tpu.memory_space<vmem>>, vector<1x32x128xbf16>
    %8 = vector.shape_cast %7 : vector<1x32x128xbf16> to vector<32x128xbf16>
    %9 = arith.truncf %4 : vector<32x128xf32> to vector<32x128xbf16>
    %10 = tpu.concatenate %8, %9 in 0 : vector<32x128xbf16>, vector<32x128xbf16> -> vector<64x128xbf16>
    %cst_6 = arith.constant dense<0.000000e+00> : vector<128x128xf32>
    %11 = tpu.matmul %2, %10, %cst_6 {dimension_numbers = #tpu.dot_dimension_numbers<[1], [0], [0], [1], [0, 0, 1, 1], [], []>} : vector<128x64xbf16>, vector<64x128xbf16>, vector<128x128xf32> -> vector<128x128xf32>
    %12 = arith.addf %11, %3 : vector<128x128xf32>
    %13 = vector.extract_strided_slice %12 {offsets = [0, 0], sizes = [32, 128], strides = [1, 1]} : vector<128x128xf32> to vector<32x128xf32>
    %14 = arith.negf %13 : vector<32x128xf32>
    %15 = math.exp %14 : vector<32x128xf32>
    %cst_7 = arith.constant 1.000000e+00 : f32
    %16 = vector.broadcast %cst_7 : f32 to vector<32x128xf32>
    %17 = arith.addf %16, %15 : vector<32x128xf32>
    %18 = arith.divf %16, %17 : vector<32x128xf32>
    %19 = vector.extract_strided_slice %12 {offsets = [32, 0], sizes = [32, 128], strides = [1, 1]} : vector<128x128xf32> to vector<32x128xf32>
    %20 = arith.negf %19 : vector<32x128xf32>
    %21 = math.exp %20 : vector<32x128xf32>
    %cst_8 = arith.constant 1.000000e+00 : f32
    %22 = vector.broadcast %cst_8 : f32 to vector<32x128xf32>
    %23 = arith.addf %22, %21 : vector<32x128xf32>
    %24 = arith.divf %22, %23 : vector<32x128xf32>
    %25 = vector.extract_strided_slice %12 {offsets = [64, 0], sizes = [32, 128], strides = [1, 1]} : vector<128x128xf32> to vector<32x128xf32>
    %26 = math.tanh %25 : vector<32x128xf32>
    %27 = vector.extract_strided_slice %12 {offsets = [96, 0], sizes = [32, 128], strides = [1, 1]} : vector<128x128xf32> to vector<32x128xf32>
    %28 = arith.negf %27 : vector<32x128xf32>
    %29 = math.exp %28 : vector<32x128xf32>
    %cst_9 = arith.constant 1.000000e+00 : f32
    %30 = vector.broadcast %cst_9 : f32 to vector<32x128xf32>
    %31 = arith.addf %30, %29 : vector<32x128xf32>
    %32 = arith.divf %30, %31 : vector<32x128xf32>
    %33 = arith.mulf %24, %5 : vector<32x128xf32>
    %34 = arith.mulf %18, %26 : vector<32x128xf32>
    %35 = arith.addf %33, %34 : vector<32x128xf32>
    %36 = math.tanh %35 : vector<32x128xf32>
    %37 = arith.mulf %32, %36 : vector<32x128xf32>
    %c1 = arith.constant 1 : index
    %c0_10 = arith.constant 0 : index
    %38 = arith.index_cast %1 : i32 to index
    %39 = vector.load %arg1[%c1, %c0_10, %38] : memref<5x32x128xbf16, #tpu.memory_space<vmem>>, vector<1x32x128xbf16>
    %40 = vector.shape_cast %39 : vector<1x32x128xbf16> to vector<32x128xbf16>
    %41 = arith.truncf %37 : vector<32x128xf32> to vector<32x128xbf16>
    %42 = tpu.concatenate %40, %41 in 0 : vector<32x128xbf16>, vector<32x128xbf16> -> vector<64x128xbf16>
    %cst_11 = arith.constant dense<0.000000e+00> : vector<128x128xf32>
    %43 = tpu.matmul %2, %42, %cst_11 {dimension_numbers = #tpu.dot_dimension_numbers<[1], [0], [0], [1], [0, 0, 1, 1], [], []>} : vector<128x64xbf16>, vector<64x128xbf16>, vector<128x128xf32> -> vector<128x128xf32>
    %44 = arith.addf %43, %3 : vector<128x128xf32>
    %45 = vector.extract_strided_slice %44 {offsets = [0, 0], sizes = [32, 128], strides = [1, 1]} : vector<128x128xf32> to vector<32x128xf32>
    %46 = arith.negf %45 : vector<32x128xf32>
    %47 = math.exp %46 : vector<32x128xf32>
    %cst_12 = arith.constant 1.000000e+00 : f32
    %48 = vector.broadcast %cst_12 : f32 to vector<32x128xf32>
    %49 = arith.addf %48, %47 : vector<32x128xf32>
    %50 = arith.divf %48, %49 : vector<32x128xf32>
    %51 = vector.extract_strided_slice %44 {offsets = [32, 0], sizes = [32, 128], strides = [1, 1]} : vector<128x128xf32> to vector<32x128xf32>
    %52 = arith.negf %51 : vector<32x128xf32>
    %53 = math.exp %52 : vector<32x128xf32>
    %cst_13 = arith.constant 1.000000e+00 : f32
    %54 = vector.broadcast %cst_13 : f32 to vector<32x128xf32>
    %55 = arith.addf %54, %53 : vector<32x128xf32>
    %56 = arith.divf %54, %55 : vector<32x128xf32>
    %57 = vector.extract_strided_slice %44 {offsets = [64, 0], sizes = [32, 128], strides = [1, 1]} : vector<128x128xf32> to vector<32x128xf32>
    %58 = math.tanh %57 : vector<32x128xf32>
    %59 = vector.extract_strided_slice %44 {offsets = [96, 0], sizes = [32, 128], strides = [1, 1]} : vector<128x128xf32> to vector<32x128xf32>
    %60 = arith.negf %59 : vector<32x128xf32>
    %61 = math.exp %60 : vector<32x128xf32>
    %cst_14 = arith.constant 1.000000e+00 : f32
    %62 = vector.broadcast %cst_14 : f32 to vector<32x128xf32>
    %63 = arith.addf %62, %61 : vector<32x128xf32>
    %64 = arith.divf %62, %63 : vector<32x128xf32>
    %65 = arith.mulf %56, %35 : vector<32x128xf32>
    %66 = arith.mulf %50, %58 : vector<32x128xf32>
    %67 = arith.addf %65, %66 : vector<32x128xf32>
    %68 = math.tanh %67 : vector<32x128xf32>
    %69 = arith.mulf %64, %68 : vector<32x128xf32>
    %c2 = arith.constant 2 : index
    %c0_15 = arith.constant 0 : index
    %70 = arith.index_cast %1 : i32 to index
    %71 = vector.load %arg1[%c2, %c0_15, %70] : memref<5x32x128xbf16, #tpu.memory_space<vmem>>, vector<1x32x128xbf16>
    %72 = vector.shape_cast %71 : vector<1x32x128xbf16> to vector<32x128xbf16>
    %73 = arith.truncf %69 : vector<32x128xf32> to vector<32x128xbf16>
    %74 = tpu.concatenate %72, %73 in 0 : vector<32x128xbf16>, vector<32x128xbf16> -> vector<64x128xbf16>
    %cst_16 = arith.constant dense<0.000000e+00> : vector<128x128xf32>
    %75 = tpu.matmul %2, %74, %cst_16 {dimension_numbers = #tpu.dot_dimension_numbers<[1], [0], [0], [1], [0, 0, 1, 1], [], []>} : vector<128x64xbf16>, vector<64x128xbf16>, vector<128x128xf32> -> vector<128x128xf32>
    %76 = arith.addf %75, %3 : vector<128x128xf32>
    %77 = vector.extract_strided_slice %76 {offsets = [0, 0], sizes = [32, 128], strides = [1, 1]} : vector<128x128xf32> to vector<32x128xf32>
    %78 = arith.negf %77 : vector<32x128xf32>
    %79 = math.exp %78 : vector<32x128xf32>
    %cst_17 = arith.constant 1.000000e+00 : f32
    %80 = vector.broadcast %cst_17 : f32 to vector<32x128xf32>
    %81 = arith.addf %80, %79 : vector<32x128xf32>
    %82 = arith.divf %80, %81 : vector<32x128xf32>
    %83 = vector.extract_strided_slice %76 {offsets = [32, 0], sizes = [32, 128], strides = [1, 1]} : vector<128x128xf32> to vector<32x128xf32>
    %84 = arith.negf %83 : vector<32x128xf32>
    %85 = math.exp %84 : vector<32x128xf32>
    %cst_18 = arith.constant 1.000000e+00 : f32
    %86 = vector.broadcast %cst_18 : f32 to vector<32x128xf32>
    %87 = arith.addf %86, %85 : vector<32x128xf32>
    %88 = arith.divf %86, %87 : vector<32x128xf32>
    %89 = vector.extract_strided_slice %76 {offsets = [64, 0], sizes = [32, 128], strides = [1, 1]} : vector<128x128xf32> to vector<32x128xf32>
    %90 = math.tanh %89 : vector<32x128xf32>
    %91 = vector.extract_strided_slice %76 {offsets = [96, 0], sizes = [32, 128], strides = [1, 1]} : vector<128x128xf32> to vector<32x128xf32>
    %92 = arith.negf %91 : vector<32x128xf32>
    %93 = math.exp %92 : vector<32x128xf32>
    %cst_19 = arith.constant 1.000000e+00 : f32
    %94 = vector.broadcast %cst_19 : f32 to vector<32x128xf32>
    %95 = arith.addf %94, %93 : vector<32x128xf32>
    %96 = arith.divf %94, %95 : vector<32x128xf32>
    %97 = arith.mulf %88, %67 : vector<32x128xf32>
    %98 = arith.mulf %82, %90 : vector<32x128xf32>
    %99 = arith.addf %97, %98 : vector<32x128xf32>
    %100 = math.tanh %99 : vector<32x128xf32>
    %101 = arith.mulf %96, %100 : vector<32x128xf32>
    %c3 = arith.constant 3 : index
    %c0_20 = arith.constant 0 : index
    %102 = arith.index_cast %1 : i32 to index
    %103 = vector.load %arg1[%c3, %c0_20, %102] : memref<5x32x128xbf16, #tpu.memory_space<vmem>>, vector<1x32x128xbf16>
    %104 = vector.shape_cast %103 : vector<1x32x128xbf16> to vector<32x128xbf16>
    %105 = arith.truncf %101 : vector<32x128xf32> to vector<32x128xbf16>
    %106 = tpu.concatenate %104, %105 in 0 : vector<32x128xbf16>, vector<32x128xbf16> -> vector<64x128xbf16>
    %cst_21 = arith.constant dense<0.000000e+00> : vector<128x128xf32>
    %107 = tpu.matmul %2, %106, %cst_21 {dimension_numbers = #tpu.dot_dimension_numbers<[1], [0], [0], [1], [0, 0, 1, 1], [], []>} : vector<128x64xbf16>, vector<64x128xbf16>, vector<128x128xf32> -> vector<128x128xf32>
    %108 = arith.addf %107, %3 : vector<128x128xf32>
    %109 = vector.extract_strided_slice %108 {offsets = [0, 0], sizes = [32, 128], strides = [1, 1]} : vector<128x128xf32> to vector<32x128xf32>
    %110 = arith.negf %109 : vector<32x128xf32>
    %111 = math.exp %110 : vector<32x128xf32>
    %cst_22 = arith.constant 1.000000e+00 : f32
    %112 = vector.broadcast %cst_22 : f32 to vector<32x128xf32>
    %113 = arith.addf %112, %111 : vector<32x128xf32>
    %114 = arith.divf %112, %113 : vector<32x128xf32>
    %115 = vector.extract_strided_slice %108 {offsets = [32, 0], sizes = [32, 128], strides = [1, 1]} : vector<128x128xf32> to vector<32x128xf32>
    %116 = arith.negf %115 : vector<32x128xf32>
    %117 = math.exp %116 : vector<32x128xf32>
    %cst_23 = arith.constant 1.000000e+00 : f32
    %118 = vector.broadcast %cst_23 : f32 to vector<32x128xf32>
    %119 = arith.addf %118, %117 : vector<32x128xf32>
    %120 = arith.divf %118, %119 : vector<32x128xf32>
    %121 = vector.extract_strided_slice %108 {offsets = [64, 0], sizes = [32, 128], strides = [1, 1]} : vector<128x128xf32> to vector<32x128xf32>
    %122 = math.tanh %121 : vector<32x128xf32>
    %123 = vector.extract_strided_slice %108 {offsets = [96, 0], sizes = [32, 128], strides = [1, 1]} : vector<128x128xf32> to vector<32x128xf32>
    %124 = arith.negf %123 : vector<32x128xf32>
    %125 = math.exp %124 : vector<32x128xf32>
    %cst_24 = arith.constant 1.000000e+00 : f32
    %126 = vector.broadcast %cst_24 : f32 to vector<32x128xf32>
    %127 = arith.addf %126, %125 : vector<32x128xf32>
    %128 = arith.divf %126, %127 : vector<32x128xf32>
    %129 = arith.mulf %120, %99 : vector<32x128xf32>
    %130 = arith.mulf %114, %122 : vector<32x128xf32>
    %131 = arith.addf %129, %130 : vector<32x128xf32>
    %132 = math.tanh %131 : vector<32x128xf32>
    %133 = arith.mulf %128, %132 : vector<32x128xf32>
    %c4 = arith.constant 4 : index
    %c0_25 = arith.constant 0 : index
    %134 = arith.index_cast %1 : i32 to index
    %135 = vector.load %arg1[%c4, %c0_25, %134] : memref<5x32x128xbf16, #tpu.memory_space<vmem>>, vector<1x32x128xbf16>
    %136 = vector.shape_cast %135 : vector<1x32x128xbf16> to vector<32x128xbf16>
    %137 = arith.truncf %133 : vector<32x128xf32> to vector<32x128xbf16>
    %138 = tpu.concatenate %136, %137 in 0 : vector<32x128xbf16>, vector<32x128xbf16> -> vector<64x128xbf16>
    %cst_26 = arith.constant dense<0.000000e+00> : vector<128x128xf32>
    %139 = tpu.matmul %2, %138, %cst_26 {dimension_numbers = #tpu.dot_dimension_numbers<[1], [0], [0], [1], [0, 0, 1, 1], [], []>} : vector<128x64xbf16>, vector<64x128xbf16>, vector<128x128xf32> -> vector<128x128xf32>
    %140 = arith.addf %139, %3 : vector<128x128xf32>
    %141 = vector.extract_strided_slice %140 {offsets = [0, 0], sizes = [32, 128], strides = [1, 1]} : vector<128x128xf32> to vector<32x128xf32>
    %142 = arith.negf %141 : vector<32x128xf32>
    %143 = math.exp %142 : vector<32x128xf32>
    %cst_27 = arith.constant 1.000000e+00 : f32
    %144 = vector.broadcast %cst_27 : f32 to vector<32x128xf32>
    %145 = arith.addf %144, %143 : vector<32x128xf32>
    %146 = arith.divf %144, %145 : vector<32x128xf32>
    %147 = vector.extract_strided_slice %140 {offsets = [32, 0], sizes = [32, 128], strides = [1, 1]} : vector<128x128xf32> to vector<32x128xf32>
    %148 = arith.negf %147 : vector<32x128xf32>
    %149 = math.exp %148 : vector<32x128xf32>
    %cst_28 = arith.constant 1.000000e+00 : f32
    %150 = vector.broadcast %cst_28 : f32 to vector<32x128xf32>
    %151 = arith.addf %150, %149 : vector<32x128xf32>
    %152 = arith.divf %150, %151 : vector<32x128xf32>
    %153 = vector.extract_strided_slice %140 {offsets = [64, 0], sizes = [32, 128], strides = [1, 1]} : vector<128x128xf32> to vector<32x128xf32>
    %154 = math.tanh %153 : vector<32x128xf32>
    %155 = vector.extract_strided_slice %140 {offsets = [96, 0], sizes = [32, 128], strides = [1, 1]} : vector<128x128xf32> to vector<32x128xf32>
    %156 = arith.negf %155 : vector<32x128xf32>
    %157 = math.exp %156 : vector<32x128xf32>
    %cst_29 = arith.constant 1.000000e+00 : f32
    %158 = vector.broadcast %cst_29 : f32 to vector<32x128xf32>
    %159 = arith.addf %158, %157 : vector<32x128xf32>
    %160 = arith.divf %158, %159 : vector<32x128xf32>
    %161 = arith.mulf %152, %131 : vector<32x128xf32>
    %162 = arith.mulf %146, %154 : vector<32x128xf32>
    %163 = arith.addf %161, %162 : vector<32x128xf32>
    %164 = math.tanh %163 : vector<32x128xf32>
    %165 = arith.mulf %160, %164 : vector<32x128xf32>
    %c0_30 = arith.constant 0 : index
    %166 = arith.index_cast %1 : i32 to index
    %167 = vector.load %arg4[%c0_30, %166] : memref<32x128xf32, #tpu.memory_space<vmem>>, vector<32x128xf32>
    tpu.vector_store %arg4[%c0_30, %166], %165 {strides = array<i32>} : memref<32x128xf32, #tpu.memory_space<vmem>>, vector<32x128xf32>,
    %c1_i32 = arith.constant 1 : i32
    return
  }
  func.func @transform_0(%arg0: i32) -> (i32, i32, i32) {
    %c0_i32 = arith.constant 0 : i32
    %c0_i32_0 = arith.constant 0 : i32
    %c0_i32_1 = arith.constant 0 : i32
    return %c0_i32, %c0_i32_0, %arg0 : i32, i32, i32
  }
  func.func @transform_1(%arg0: i32) -> (i32, i32) {
    %c0_i32 = arith.constant 0 : i32
    %c0_i32_0 = arith.constant 0 : i32
    %c0_i32_1 = arith.constant 0 : i32
    return %c0_i32, %c0_i32_0 : i32, i32
  }
  func.func @transform_2(%arg0: i32) -> (i32, i32) {
    %c0_i32 = arith.constant 0 : i32
    %c0_i32_0 = arith.constant 0 : i32
    %c0_i32_1 = arith.constant 0 : i32
    return %c0_i32, %c0_i32_0 : i32, i32
  }
  func.func @transform_3(%arg0: i32) -> (i32, i32) {
    %c0_i32 = arith.constant 0 : i32
    %c0_i32_0 = arith.constant 0 : i32
    return %c0_i32, %arg0 : i32, i32
  }
}

</mosaic_0001>

<llo_original>
// kernel: time_distributed_lstm.1
$region0: #{time_distributed_lstm.1}
  #allocation0 [shape = 'u32[]', space=smem, size = 0x4, offset = 0x4, fixed_abs, tag = 'smem constant byte address 0x4 - core index']
  #allocation1 [shape = 'u32[144,128]{1,0:T(1,128)}', space=vmem, size = 0x12000, scoped, tag = 'internal scratch']
  %s0 = inlined_call_operand.vmem [shape: bf16[5,32,128], index: 0, kind: input, shape index: {}]
  %s1 = inlined_call_operand.vmem [shape: bf16[128,64], index: 1, kind: input, shape index: {}]
  %s2 = inlined_call_operand.vmem [shape: f32[128,128], index: 2, kind: input, shape index: {}]
  %s3 = inlined_call_operand.vmem [shape: f32[32,128], index: 3, kind: output, shape index: {}]
  %s4 = sld [smem:[#allocation0]]
  $region22: #{time_distributed_lstm.1} parent=0
    _
  %s6 = ssub.s32 1, %s4
  %s7 = scalar_select 0, %s6, %s4
  // Predicated region
  $region2: #{time_distributed_lstm.1} parent=0 // pred_check
    _
  $region3: #{time_distributed_lstm.1} parent=0 // pred_check_branch
    %9 = sbr.rel (0) target = $region5
  $region4: #{time_distributed_lstm.1} parent=0 // pred_region
    _
  $region5: #{time_distributed_lstm.1} parent=0 // pred_fallthru
    _
  // Predicated region
  $region6: #{time_distributed_lstm.1} parent=0 // pred_check
    _
  $region7: #{time_distributed_lstm.1} parent=0 // pred_check_branch
    %11 = sbr.rel (0) target = $region9
  $region8: #{time_distributed_lstm.1} parent=0 // pred_region
    _
  $region9: #{time_distributed_lstm.1} parent=0 // pred_fallthru
    _
  // Predicated region
  $region10: #{time_distributed_lstm.1} parent=0 // pred_check
    _
  $region11: #{time_distributed_lstm.1} parent=0 // pred_check_branch
    %13 = sbr.rel (0) target = $region13
  $region12: #{time_distributed_lstm.1} parent=0 // pred_region
    _
  $region13: #{time_distributed_lstm.1} parent=0 // pred_fallthru
    _
  %v15 = vld [vmem:[%s1] sm:$0xf]
  %v16 = vld [vmem:[%s1 + $0x4] sm:$0xf]
  %v17 = vld [vmem:[%s1 + $0x8] sm:$0xf]
  %v18 = vld [vmem:[%s1 + $0xc] sm:$0xf]
  %v19 = vld [vmem:[%s1 + $0x10] sm:$0xf]
  %v20 = vld [vmem:[%s1 + $0x14] sm:$0xf]
  %v21 = vld [vmem:[%s1 + $0x18] sm:$0xf]
  %v22 = vld [vmem:[%s1 + $0x1c] sm:$0xf]
  %v23 = vld [vmem:[%s1 + $0x20] sm:$0xf]
  %v24 = vld [vmem:[%s1 + $0x24] sm:$0xf]
  %v25 = vld [vmem:[%s1 + $0x28] sm:$0xf]
  %v26 = vld [vmem:[%s1 + $0x2c] sm:$0xf]
  %v27 = vld [vmem:[%s1 + $0x30] sm:$0xf]
  %v28 = vld [vmem:[%s1 + $0x34] sm:$0xf]
  %v29 = vld [vmem:[%s1 + $0x38] sm:$0xf]
  %v30 = vld [vmem:[%s1 + $0x3c] sm:$0xf]
  %v31 = vld [vmem:[%s2] sm:$0xff]
  %v32 = vld [vmem:[%s2 + $0x8] sm:$0xff]
  %v33 = vld [vmem:[%s2 + $0x10] sm:$0xff]
  %v34 = vld [vmem:[%s2 + $0x18] sm:$0xff]
  %v35 = vld [vmem:[%s2 + $0x20] sm:$0xff]
  %v36 = vld [vmem:[%s2 + $0x28] sm:$0xff]
  %v37 = vld [vmem:[%s2 + $0x30] sm:$0xff]
  %v38 = vld [vmem:[%s2 + $0x38] sm:$0xff]
  %v39 = vld [vmem:[%s2 + $0x40] sm:$0xff]
  %v40 = vld [vmem:[%s2 + $0x48] sm:$0xff]
  %v41 = vld [vmem:[%s2 + $0x50] sm:$0xff]
  %v42 = vld [vmem:[%s2 + $0x58] sm:$0xff]
  %v43 = vld [vmem:[%s2 + $0x60] sm:$0xff]
  %v44 = vld [vmem:[%s2 + $0x68] sm:$0xff]
  %v45 = vld [vmem:[%s2 + $0x70] sm:$0xff]
  %v46 = vld [vmem:[%s2 + $0x78] sm:$0xff]
  %v47 = vld [vmem:[%s0] sm:$0xf]
  %v48 = vld [vmem:[%s0 + $0x4] sm:$0xf]
  %v49 = vld [vmem:[%s0 + $0x8] sm:$0xf]
  %v50 = vld [vmem:[%s0 + $0xc] sm:$0xf]
  %v55 = vunpack.c.l.b16 %v47
  %v56 = vunpack.c.l.b16 %v48
  %v57 = vunpack.c.l.b16 %v49
  %v58 = vunpack.c.l.b16 %v50
  %v59 = vpack.c.b16 %v56, %v55
  %v60 = vpack.c.b16 %v58, %v57
  %v79 = vunpack.c.l.b16 %v15
  %v80 = vunpack.c.l.b16 %v16
  %v81 = vunpack.c.l.b16 %v17
  %v82 = vunpack.c.l.b16 %v18
  %v83 = vunpack.c.l.b16 %v19
  %v84 = vunpack.c.l.b16 %v20
  %v85 = vunpack.c.l.b16 %v21
  %v86 = vunpack.c.l.b16 %v22
  %v87 = vunpack.c.l.b16 %v23
  %v88 = vunpack.c.l.b16 %v24
  %v89 = vunpack.c.l.b16 %v25
  %v90 = vunpack.c.l.b16 %v26
  %v91 = vunpack.c.l.b16 %v27
  %v92 = vunpack.c.l.b16 %v28
  %v93 = vunpack.c.l.b16 %v29
  %v94 = vunpack.c.l.b16 %v30
  %v95 = vpack.c.b16 %v80, %v79
  %v96 = vpack.c.b16 %v82, %v81
  %v97 = vpack.c.b16 %v84, %v83
  %v98 = vpack.c.b16 %v86, %v85
  %v99 = vpack.c.b16 %v88, %v87
  %v100 = vpack.c.b16 %v90, %v89
  %v101 = vpack.c.b16 %v92, %v91
  %v102 = vpack.c.b16 %v94, %v93
  %vm103 = vcmask 523264
  %v105 = vsel %vm103, %v95, 0
  %v108 = vsel %vm103, %v96, 0
  %v111 = vsel %vm103, %v97, 0
  %v114 = vsel %vm103, %v98, 0
  %v117 = vsel %vm103, %v99, 0
  %v120 = vsel %vm103, %v100, 0
  %v123 = vsel %vm103, %v101, 0
  %v126 = vsel %vm103, %v102, 0
  %128 = vmatprep.subr.bf16.mxu0 0
  %129 = vmatpush1.bf16.msra.mxu0 0
  %130 = vmatprep.subr.bf16.mxu0 0
  %131 = vmatpush1.bf16.msra.mxu0 0
  %132 = vmatprep.subr.bf16.mxu0 0
  %133 = vmatpush1.bf16.msra.mxu0 0
  %134 = vmatprep.subr.bf16.mxu0 0
  %135 = vmatpush1.bf16.msra.mxu0 0
  %136 = vmatprep.subr.bf16.mxu0 0
  %137 = vmatpush1.bf16.msra.mxu0 0
  %138 = vmatprep.subr.bf16.mxu0 0
  %139 = vmatpush1.bf16.msra.mxu0 0
  %140 = vmatprep.subr.bf16.mxu0 0
  %141 = vmatpush1.bf16.msra.mxu0 %v60
  %142 = vmatprep.subr.bf16.mxu0 0
  %143 = vmatpush1.bf16.msra.mxu0 %v59
  %144 = vmatprep.subr.bf16.mxu0 0
  %145 = vmatpush2.bf16.msra.mxu0 0
  %146 = vmatprep.subr.bf16.mxu0 0
  %147 = vmatpush2.bf16.msra.mxu0 0
  %148 = vmatprep.subr.bf16.mxu0 0
  %149 = vmatpush2.bf16.msra.mxu0 0
  %150 = vmatprep.subr.bf16.mxu0 0
  %151 = vmatpush2.bf16.msra.mxu0 0
  %152 = vmatprep.subr.bf16.mxu0 0
  %153 = vmatpush2.bf16.msra.mxu0 0
  %154 = vmatprep.subr.bf16.mxu0 0
  %155 = vmatpush2.bf16.msra.mxu0 0
  %156 = vmatprep.subr.bf16.mxu0 0
  %157 = vmatpush2.bf16.msra.mxu0 0
  %158 = vmatprep.subr.bf16.mxu0 0
  %159 = vmatpush2.bf16.msra.mxu0 0
  %160 = vmatprep.mubr.bf16.mxu0 0
  %161 = vmatmul.mubr.bf16.gmra.mxu0 %v105
  %v162 = vpop.f32.mrf.mxu0
  %v163 = vadd.f32 %v31, %v162
  %v164 = vpop.f32.mrf.mxu0
  %v165 = vpop.f32.mrf.mxu0
  %v166 = vadd.f32 %v32, %v165
  %v167 = vpop.f32.mrf.mxu0
  %168 = vmatprep.mubr.bf16.mxu0 0
  %169 = vmatmul.mubr.bf16.gmra.mxu0 %v108
  %v170 = vpop.f32.mrf.mxu0
  %v171 = vadd.f32 %v33, %v170
  %v172 = vpop.f32.mrf.mxu0
  %v173 = vpop.f32.mrf.mxu0
  %v174 = vadd.f32 %v34, %v173
  %v175 = vpop.f32.mrf.mxu0
  %176 = vmatprep.mubr.bf16.mxu0 0
  %177 = vmatmul.mubr.bf16.gmra.mxu0 %v111
  %v178 = vpop.f32.mrf.mxu0
  %v179 = vadd.f32 %v35, %v178
  %v180 = vpop.f32.mrf.mxu0
  %v181 = vpop.f32.mrf.mxu0
  %v182 = vadd.f32 %v36, %v181
  %v183 = vpop.f32.mrf.mxu0
  %184 = vmatprep.mubr.bf16.mxu0 0
  %185 = vmatmul.mubr.bf16.gmra.mxu0 %v114
  %v186 = vpop.f32.mrf.mxu0
  %v187 = vadd.f32 %v37, %v186
  %v188 = vpop.f32.mrf.mxu0
  %v189 = vpop.f32.mrf.mxu0
  %v190 = vadd.f32 %v38, %v189
  %v191 = vpop.f32.mrf.mxu0
  %192 = vmatprep.mubr.bf16.mxu0 0
  %193 = vmatmul.mubr.bf16.gmra.mxu0 %v117
  %v194 = vpop.f32.mrf.mxu0
  %v195 = vadd.f32 %v39, %v194
  %v196 = vpop.f32.mrf.mxu0
  %v197 = vpop.f32.mrf.mxu0
  %v198 = vadd.f32 %v40, %v197
  %v199 = vpop.f32.mrf.mxu0
  %200 = vmatprep.mubr.bf16.mxu0 0
  %201 = vmatmul.mubr.bf16.gmra.mxu0 %v120
  %v202 = vpop.f32.mrf.mxu0
  %v203 = vadd.f32 %v41, %v202
  %v204 = vpop.f32.mrf.mxu0
  %v205 = vpop.f32.mrf.mxu0
  %v206 = vadd.f32 %v42, %v205
  %v207 = vpop.f32.mrf.mxu0
  %208 = vmatprep.mubr.bf16.mxu0 0
  %209 = vmatmul.mubr.bf16.gmra.mxu0 %v123
  %v210 = vpop.f32.mrf.mxu0
  %v211 = vadd.f32 %v43, %v210
  %v212 = vpop.f32.mrf.mxu0
  %v213 = vpop.f32.mrf.mxu0
  %v214 = vadd.f32 %v44, %v213
  %v215 = vpop.f32.mrf.mxu0
  %216 = vmatprep.mubr.bf16.mxu0 0
  %217 = vmatmul.mubr.bf16.gmra.mxu0 %v126
  %v218 = vpop.f32.mrf.mxu0
  %v219 = vadd.f32 %v45, %v218
  %v220 = vpop.f32.mrf.mxu0
  %v221 = vpop.f32.mrf.mxu0
  %v222 = vadd.f32 %v46, %v221
  %v223 = vpop.f32.mrf.mxu0
  %224 = vdwg.mxu0
  %v225 = vxor.u32 %v163, 2147483648
  %v226 = vxor.u32 %v166, 2147483648
  %v227 = vxor.u32 %v171, 2147483648
  %v228 = vxor.u32 %v174, 2147483648
  %v229 = vmul.f32 %v225, 1.442695
  %v230 = vpow.pop %v229
  %v231 = vmul.f32 %v226, 1.442695
  %v232 = vpow.pop %v231
  %v233 = vmul.f32 %v227, 1.442695
  %v234 = vpow.pop %v233
  %v235 = vmul.f32 %v228, 1.442695
  %v236 = vpow.pop %v235
  %v237 = vadd.f32 %v230, 1.0
  %v238 = vadd.f32 %v232, 1.0
  %v239 = vadd.f32 %v234, 1.0
  %v240 = vadd.f32 %v236, 1.0
  %v241 = vrcp.pop %v237
  %v242 = vmul.f32 1.0, %v241
  %v243 = vrcp.pop %v238
  %v244 = vmul.f32 1.0, %v243
  %v245 = vrcp.pop %v239
  %v246 = vmul.f32 1.0, %v245
  %v247 = vrcp.pop %v240
  %v248 = vmul.f32 1.0, %v247
  %v249 = vxor.u32 %v179, 2147483648
  %v250 = vxor.u32 %v182, 2147483648
  %v251 = vxor.u32 %v187, 2147483648
  %v252 = vxor.u32 %v190, 2147483648
  %v253 = vmul.f32 %v249, 1.442695
  %v254 = vpow.pop %v253
  %v255 = vmul.f32 %v250, 1.442695
  %v256 = vpow.pop %v255
  %v257 = vmul.f32 %v251, 1.442695
  %v258 = vpow.pop %v257
  %v259 = vmul.f32 %v252, 1.442695
  %v260 = vpow.pop %v259
  %v261 = vadd.f32 %v254, 1.0
  %v262 = vadd.f32 %v256, 1.0
  %v263 = vadd.f32 %v258, 1.0
  %v264 = vadd.f32 %v260, 1.0
  %v265 = vrcp.pop %v261
  %v266 = vmul.f32 1.0, %v265
  %v267 = vrcp.pop %v262
  %v268 = vmul.f32 1.0, %v267
  %v269 = vrcp.pop %v263
  %v270 = vmul.f32 1.0, %v269
  %v271 = vrcp.pop %v264
  %v272 = vmul.f32 1.0, %v271
  %v273 = vtanh.pop %v195
  %v274 = vtanh.pop %v198
  %v275 = vtanh.pop %v203
  %v276 = vtanh.pop %v206
  %v277 = vxor.u32 %v211, 2147483648
  %v278 = vxor.u32 %v214, 2147483648
  %v279 = vxor.u32 %v219, 2147483648
  %v280 = vxor.u32 %v222, 2147483648
  %v281 = vmul.f32 %v277, 1.442695
  %v282 = vpow.pop %v281
  %v283 = vmul.f32 %v278, 1.442695
  %v284 = vpow.pop %v283
  %v285 = vmul.f32 %v279, 1.442695
  %v286 = vpow.pop %v285
  %v287 = vmul.f32 %v280, 1.442695
  %v288 = vpow.pop %v287
  %v289 = vadd.f32 %v282, 1.0
  %v290 = vadd.f32 %v284, 1.0
  %v291 = vadd.f32 %v286, 1.0
  %v292 = vadd.f32 %v288, 1.0
  %v293 = vrcp.pop %v289
  %v294 = vmul.f32 1.0, %v293
  %v295 = vrcp.pop %v290
  %v296 = vmul.f32 1.0, %v295
  %v297 = vrcp.pop %v291
  %v298 = vmul.f32 1.0, %v297
  %v299 = vrcp.pop %v292
  %v300 = vmul.f32 1.0, %v299
  %v301 = vmul.f32 %v266, 0.0
  %v302 = vmul.f32 %v268, 0.0
  %v303 = vmul.f32 %v270, 0.0
  %v304 = vmul.f32 %v272, 0.0
  %v305 = vmul.f32 %v242, %v273
  %v306 = vmul.f32 %v244, %v274
  %v307 = vmul.f32 %v246, %v275
  %v308 = vmul.f32 %v248, %v276
  %v309 = vadd.f32 %v301, %v305
  %v310 = vadd.f32 %v302, %v306
  %v311 = vadd.f32 %v303, %v307
  %v312 = vadd.f32 %v304, %v308
  %v313 = vtanh.pop %v309
  %v314 = vtanh.pop %v310
  %v315 = vtanh.pop %v311
  %v316 = vtanh.pop %v312
  %v317 = vmul.f32 %v294, %v313
  %v318 = vmul.f32 %v296, %v314
  %v319 = vmul.f32 %v298, %v315
  %v320 = vmul.f32 %v300, %v316
  %s321 = sadd.s32 0, 4
  %s322 = smul.addr %s321, 4
  %s323 = scalar_lea.vmem %s0, %s322
  %v324 = vld [vmem:[%s323] sm:$0xf]
  %v325 = vld [vmem:[%s323 + $0x4] sm:$0xf]
  %v326 = vld [vmem:[%s323 + $0x8] sm:$0xf]
  %v327 = vld [vmem:[%s323 + $0xc] sm:$0xf]
  %v328 = vpack.c.bf16 %v318, %v317
  %v329 = vpack.c.bf16 %v320, %v319
  %v334 = vunpack.c.l.b16 %v324
  %v335 = vunpack.c.l.b16 %v325
  %v336 = vunpack.c.l.b16 %v326
  %v337 = vunpack.c.l.b16 %v327
  %v338 = vpack.c.b16 %v335, %v334
  %v339 = vpack.c.b16 %v337, %v336
  %342 = vmatprep.subr.bf16.mxu0 0
  %343 = vmatpush1.bf16.msra.mxu0 0
  %344 = vmatprep.subr.bf16.mxu0 0
  %345 = vmatpush1.bf16.msra.mxu0 0
  %346 = vmatprep.subr.bf16.mxu0 0
  %347 = vmatpush1.bf16.msra.mxu0 0
  %348 = vmatprep.subr.bf16.mxu0 0
  %349 = vmatpush1.bf16.msra.mxu0 0
  %350 = vmatprep.subr.bf16.mxu0 0
  %351 = vmatpush1.bf16.msra.mxu0 %v329
  %352 = vmatprep.subr.bf16.mxu0 0
  %353 = vmatpush1.bf16.msra.mxu0 %v328
  %354 = vmatprep.subr.bf16.mxu0 0
  %355 = vmatpush1.bf16.msra.mxu0 %v339
  %356 = vmatprep.subr.bf16.mxu0 0
  %357 = vmatpush1.bf16.msra.mxu0 %v338
  %358 = vmatprep.subr.bf16.mxu0 0
  %359 = vmatpush2.bf16.msra.mxu0 0
  %360 = vmatprep.subr.bf16.mxu0 0
  %361 = vmatpush2.bf16.msra.mxu0 0
  %362 = vmatprep.subr.bf16.mxu0 0
  %363 = vmatpush2.bf16.msra.mxu0 0
  %364 = vmatprep.subr.bf16.mxu0 0
  %365 = vmatpush2.bf16.msra.mxu0 0
  %366 = vmatprep.subr.bf16.mxu0 0
  %367 = vmatpush2.bf16.msra.mxu0 0
  %368 = vmatprep.subr.bf16.mxu0 0
  %369 = vmatpush2.bf16.msra.mxu0 0
  %370 = vmatprep.subr.bf16.mxu0 0
  %371 = vmatpush2.bf16.msra.mxu0 0
  %372 = vmatprep.subr.bf16.mxu0 0
  %373 = vmatpush2.bf16.msra.mxu0 0
  %374 = vmatprep.mubr.bf16.mxu0 0
  %375 = vmatmul.mubr.bf16.gmra.mxu0 %v105
  %v376 = vpop.f32.mrf.mxu0
  %v377 = vadd.f32 %v31, %v376
  %v378 = vpop.f32.mrf.mxu0
  %v379 = vpop.f32.mrf.mxu0
  %v380 = vadd.f32 %v32, %v379
  %v381 = vpop.f32.mrf.mxu0
  %382 = vmatprep.mubr.bf16.mxu0 0
  %383 = vmatmul.mubr.bf16.gmra.mxu0 %v108
  %v384 = vpop.f32.mrf.mxu0
  %v385 = vadd.f32 %v33, %v384
  %v386 = vpop.f32.mrf.mxu0
  %v387 = vpop.f32.mrf.mxu0
  %v388 = vadd.f32 %v34, %v387
  %v389 = vpop.f32.mrf.mxu0
  %390 = vmatprep.mubr.bf16.mxu0 0
  %391 = vmatmul.mubr.bf16.gmra.mxu0 %v111
  %v392 = vpop.f32.mrf.mxu0
  %v393 = vadd.f32 %v35, %v392
  %v394 = vpop.f32.mrf.mxu0
  %v395 = vpop.f32.mrf.mxu0
  %v396 = vadd.f32 %v36, %v395
  %v397 = vpop.f32.mrf.mxu0
  %398 = vmatprep.mubr.bf16.mxu0 0
  %399 = vmatmul.mubr.bf16.gmra.mxu0 %v114
  %v400 = vpop.f32.mrf.mxu0
  %v401 = vadd.f32 %v37, %v400
  %v402 = vpop.f32.mrf.mxu0
  %v403 = vpop.f32.mrf.mxu0
  %v404 = vadd.f32 %v38, %v403
  %v405 = vpop.f32.mrf.mxu0
  %406 = vmatprep.mubr.bf16.mxu0 0
  %407 = vmatmul.mubr.bf16.gmra.mxu0 %v117
  %v408 = vpop.f32.mrf.mxu0
  %v409 = vadd.f32 %v39, %v408
  %v410 = vpop.f32.mrf.mxu0
  %v411 = vpop.f32.mrf.mxu0
  %v412 = vadd.f32 %v40, %v411
  %v413 = vpop.f32.mrf.mxu0
  %414 = vmatprep.mubr.bf16.mxu0 0
  %415 = vmatmul.mubr.bf16.gmra.mxu0 %v120
  %v416 = vpop.f32.mrf.mxu0
  %v417 = vadd.f32 %v41, %v416
  %v418 = vpop.f32.mrf.mxu0
  %v419 = vpop.f32.mrf.mxu0
  %v420 = vadd.f32 %v42, %v419
  %v421 = vpop.f32.mrf.mxu0
  %422 = vmatprep.mubr.bf16.mxu0 0
  %423 = vmatmul.mubr.bf16.gmra.mxu0 %v123
  %v424 = vpop.f32.mrf.mxu0
  %v425 = vadd.f32 %v43, %v424
  %v426 = vpop.f32.mrf.mxu0
  %v427 = vpop.f32.mrf.mxu0
  %v428 = vadd.f32 %v44, %v427
  %v429 = vpop.f32.mrf.mxu0
  %430 = vmatprep.mubr.bf16.mxu0 0
  %431 = vmatmul.mubr.bf16.gmra.mxu0 %v126
  %v432 = vpop.f32.mrf.mxu0
  %v433 = vadd.f32 %v45, %v432
  %v434 = vpop.f32.mrf.mxu0
  %v435 = vpop.f32.mrf.mxu0
  %v436 = vadd.f32 %v46, %v435
  %v437 = vpop.f32.mrf.mxu0
  %438 = vdwg.mxu0
  %v439 = vxor.u32 %v377, 2147483648
  %v440 = vxor.u32 %v380, 2147483648
  %v441 = vxor.u32 %v385, 2147483648
  %v442 = vxor.u32 %v388, 2147483648
  %v443 = vmul.f32 %v439, 1.442695
  %v444 = vpow.pop %v443
  %v445 = vmul.f32 %v440, 1.442695
  %v446 = vpow.pop %v445
  %v447 = vmul.f32 %v441, 1.442695
  %v448 = vpow.pop %v447
  %v449 = vmul.f32 %v442, 1.442695
  %v450 = vpow.pop %v449
  %v451 = vadd.f32 %v444, 1.0
  %v452 = vadd.f32 %v446, 1.0
  %v453 = vadd.f32 %v448, 1.0
  %v454 = vadd.f32 %v450, 1.0
  %v455 = vrcp.pop %v451
  %v456 = vmul.f32 1.0, %v455
  %v457 = vrcp.pop %v452
  %v458 = vmul.f32 1.0, %v457
  %v459 = vrcp.pop %v453
  %v460 = vmul.f32 1.0, %v459
  %v461 = vrcp.pop %v454
  %v462 = vmul.f32 1.0, %v461
  %v463 = vxor.u32 %v393, 2147483648
  %v464 = vxor.u32 %v396, 2147483648
  %v465 = vxor.u32 %v401, 2147483648
  %v466 = vxor.u32 %v404, 2147483648
  %v467 = vmul.f32 %v463, 1.442695
  %v468 = vpow.pop %v467
  %v469 = vmul.f32 %v464, 1.442695
  %v470 = vpow.pop %v469
  %v471 = vmul.f32 %v465, 1.442695
  %v472 = vpow.pop %v471
  %v473 = vmul.f32 %v466, 1.442695
  %v474 = vpow.pop %v473
  %v475 = vadd.f32 %v468, 1.0
  %v476 = vadd.f32 %v470, 1.0
  %v477 = vadd.f32 %v472, 1.0
  %v478 = vadd.f32 %v474, 1.0
  %v479 = vrcp.pop %v475
  %v480 = vmul.f32 1.0, %v479
  %v481 = vrcp.pop %v476
  %v482 = vmul.f32 1.0, %v481
  %v483 = vrcp.pop %v477
  %v484 = vmul.f32 1.0, %v483
  %v485 = vrcp.pop %v478
  %v486 = vmul.f32 1.0, %v485
  %v487 = vtanh.pop %v409
  %v488 = vtanh.pop %v412
  %v489 = vtanh.pop %v417
  %v490 = vtanh.pop %v420
  %v491 = vxor.u32 %v425, 2147483648
  %v492 = vxor.u32 %v428, 2147483648
  %v493 = vxor.u32 %v433, 2147483648
  %v494 = vxor.u32 %v436, 2147483648
  %v495 = vmul.f32 %v491, 1.442695
  %v496 = vpow.pop %v495
  %v497 = vmul.f32 %v492, 1.442695
  %v498 = vpow.pop %v497
  %v499 = vmul.f32 %v493, 1.442695
  %v500 = vpow.pop %v499
  %v501 = vmul.f32 %v494, 1.442695
  %v502 = vpow.pop %v501
  %v503 = vadd.f32 %v496, 1.0
  %v504 = vadd.f32 %v498, 1.0
  %v505 = vadd.f32 %v500, 1.0
  %v506 = vadd.f32 %v502, 1.0
  %v507 = vrcp.pop %v503
  %v508 = vmul.f32 1.0, %v507
  %v509 = vrcp.pop %v504
  %v510 = vmul.f32 1.0, %v509
  %v511 = vrcp.pop %v505
  %v512 = vmul.f32 1.0, %v511
  %v513 = vrcp.pop %v506
  %v514 = vmul.f32 1.0, %v513
  %v515 = vmul.f32 %v480, %v309
  %v516 = vmul.f32 %v482, %v310
  %v517 = vmul.f32 %v484, %v311
  %v518 = vmul.f32 %v486, %v312
  %v519 = vmul.f32 %v456, %v487
  %v520 = vmul.f32 %v458, %v488
  %v521 = vmul.f32 %v460, %v489
  %v522 = vmul.f32 %v462, %v490
  %v523 = vadd.f32 %v515, %v519
  %v524 = vadd.f32 %v516, %v520
  %v525 = vadd.f32 %v517, %v521
  %v526 = vadd.f32 %v518, %v522
  %v527 = vtanh.pop %v523
  %v528 = vtanh.pop %v524
  %v529 = vtanh.pop %v525
  %v530 = vtanh.pop %v526
  %v531 = vmul.f32 %v508, %v527
  %v532 = vmul.f32 %v510, %v528
  %v533 = vmul.f32 %v512, %v529
  %v534 = vmul.f32 %v514, %v530
  %s535 = sadd.s32 0, 8
  %s536 = smul.addr %s535, 4
  %s537 = scalar_lea.vmem %s0, %s536
  %v538 = vld [vmem:[%s537] sm:$0xf]
  %v539 = vld [vmem:[%s537 + $0x4] sm:$0xf]
  %v540 = vld [vmem:[%s537 + $0x8] sm:$0xf]
  %v541 = vld [vmem:[%s537 + $0xc] sm:$0xf]
  %v542 = vpack.c.bf16 %v532, %v531
  %v543 = vpack.c.bf16 %v534, %v533
  %v548 = vunpack.c.l.b16 %v538
  %v549 = vunpack.c.l.b16 %v539
  %v550 = vunpack.c.l.b16 %v540
  %v551 = vunpack.c.l.b16 %v541
  %v552 = vpack.c.b16 %v549, %v548
  %v553 = vpack.c.b16 %v551, %v550
  %556 = vmatprep.subr.bf16.mxu0 0
  %557 = vmatpush1.bf16.msra.mxu0 0
  %558 = vmatprep.subr.bf16.mxu0 0
  %559 = vmatpush1.bf16.msra.mxu0 0
  %560 = vmatprep.subr.bf16.mxu0 0
  %561 = vmatpush1.bf16.msra.mxu0 0
  %562 = vmatprep.subr.bf16.mxu0 0
  %563 = vmatpush1.bf16.msra.mxu0 0
  %564 = vmatprep.subr.bf16.mxu0 0
  %565 = vmatpush1.bf16.msra.mxu0 %v543
  %566 = vmatprep.subr.bf16.mxu0 0
  %567 = vmatpush1.bf16.msra.mxu0 %v542
  %568 = vmatprep.subr.bf16.mxu0 0
  %569 = vmatpush1.bf16.msra.mxu0 %v553
  %570 = vmatprep.subr.bf16.mxu0 0
  %571 = vmatpush1.bf16.msra.mxu0 %v552
  %572 = vmatprep.subr.bf16.mxu0 0
  %573 = vmatpush2.bf16.msra.mxu0 0
  %574 = vmatprep.subr.bf16.mxu0 0
  %575 = vmatpush2.bf16.msra.mxu0 0
  %576 = vmatprep.subr.bf16.mxu0 0
  %577 = vmatpush2.bf16.msra.mxu0 0
  %578 = vmatprep.subr.bf16.mxu0 0
  %579 = vmatpush2.bf16.msra.mxu0 0
  %580 = vmatprep.subr.bf16.mxu0 0
  %581 = vmatpush2.bf16.msra.mxu0 0
  %582 = vmatprep.subr.bf16.mxu0 0
  %583 = vmatpush2.bf16.msra.mxu0 0
  %584 = vmatprep.subr.bf16.mxu0 0
  %585 = vmatpush2.bf16.msra.mxu0 0
  %586 = vmatprep.subr.bf16.mxu0 0
  %587 = vmatpush2.bf16.msra.mxu0 0
  %588 = vmatprep.mubr.bf16.mxu0 0
  %589 = vmatmul.mubr.bf16.gmra.mxu0 %v105
  %v590 = vpop.f32.mrf.mxu0
  %v591 = vadd.f32 %v31, %v590
  %v592 = vpop.f32.mrf.mxu0
  %v593 = vpop.f32.mrf.mxu0
  %v594 = vadd.f32 %v32, %v593
  %v595 = vpop.f32.mrf.mxu0
  %596 = vmatprep.mubr.bf16.mxu0 0
  %597 = vmatmul.mubr.bf16.gmra.mxu0 %v108
  %v598 = vpop.f32.mrf.mxu0
  %v599 = vadd.f32 %v33, %v598
  %v600 = vpop.f32.mrf.mxu0
  %v601 = vpop.f32.mrf.mxu0
  %v602 = vadd.f32 %v34, %v601
  %v603 = vpop.f32.mrf.mxu0
  %604 = vmatprep.mubr.bf16.mxu0 0
  %605 = vmatmul.mubr.bf16.gmra.mxu0 %v111
  %v606 = vpop.f32.mrf.mxu0
  %v607 = vadd.f32 %v35, %v606
  %v608 = vpop.f32.mrf.mxu0
  %v609 = vpop.f32.mrf.mxu0
  %v610 = vadd.f32 %v36, %v609
  %v611 = vpop.f32.mrf.mxu0
  %612 = vmatprep.mubr.bf16.mxu0 0
  %613 = vmatmul.mubr.bf16.gmra.mxu0 %v114
  %v614 = vpop.f32.mrf.mxu0
  %v615 = vadd.f32 %v37, %v614
  %v616 = vpop.f32.mrf.mxu0
  %v617 = vpop.f32.mrf.mxu0
  %v618 = vadd.f32 %v38, %v617
  %v619 = vpop.f32.mrf.mxu0
  %620 = vmatprep.mubr.bf16.mxu0 0
  %621 = vmatmul.mubr.bf16.gmra.mxu0 %v117
  %v622 = vpop.f32.mrf.mxu0
  %v623 = vadd.f32 %v39, %v622
  %v624 = vpop.f32.mrf.mxu0
  %v625 = vpop.f32.mrf.mxu0
  %v626 = vadd.f32 %v40, %v625
  %v627 = vpop.f32.mrf.mxu0
  %628 = vmatprep.mubr.bf16.mxu0 0
  %629 = vmatmul.mubr.bf16.gmra.mxu0 %v120
  %v630 = vpop.f32.mrf.mxu0
  %v631 = vadd.f32 %v41, %v630
  %v632 = vpop.f32.mrf.mxu0
  %v633 = vpop.f32.mrf.mxu0
  %v634 = vadd.f32 %v42, %v633
  %v635 = vpop.f32.mrf.mxu0
  %636 = vmatprep.mubr.bf16.mxu0 0
  %637 = vmatmul.mubr.bf16.gmra.mxu0 %v123
  %v638 = vpop.f32.mrf.mxu0
  %v639 = vadd.f32 %v43, %v638
  %v640 = vpop.f32.mrf.mxu0
  %v641 = vpop.f32.mrf.mxu0
  %v642 = vadd.f32 %v44, %v641
  %v643 = vpop.f32.mrf.mxu0
  %644 = vmatprep.mubr.bf16.mxu0 0
  %645 = vmatmul.mubr.bf16.gmra.mxu0 %v126
  %v646 = vpop.f32.mrf.mxu0
  %v647 = vadd.f32 %v45, %v646
  %v648 = vpop.f32.mrf.mxu0
  %v649 = vpop.f32.mrf.mxu0
  %v650 = vadd.f32 %v46, %v649
  %v651 = vpop.f32.mrf.mxu0
  %652 = vdwg.mxu0
  %v653 = vxor.u32 %v591, 2147483648
  %v654 = vxor.u32 %v594, 2147483648
  %v655 = vxor.u32 %v599, 2147483648
  %v656 = vxor.u32 %v602, 2147483648
  %v657 = vmul.f32 %v653, 1.442695
  %v658 = vpow.pop %v657
  %v659 = vmul.f32 %v654, 1.442695
  %v660 = vpow.pop %v659
  %v661 = vmul.f32 %v655, 1.442695
  %v662 = vpow.pop %v661
  %v663 = vmul.f32 %v656, 1.442695
  %v664 = vpow.pop %v663
  %v665 = vadd.f32 %v658, 1.0
  %v666 = vadd.f32 %v660, 1.0
  %v667 = vadd.f32 %v662, 1.0
  %v668 = vadd.f32 %v664, 1.0
  %v669 = vrcp.pop %v665
  %v670 = vmul.f32 1.0, %v669
  %v671 = vrcp.pop %v666
  %v672 = vmul.f32 1.0, %v671
  %v673 = vrcp.pop %v667
  %v674 = vmul.f32 1.0, %v673
  %v675 = vrcp.pop %v668
  %v676 = vmul.f32 1.0, %v675
  %v677 = vxor.u32 %v607, 2147483648
  %v678 = vxor.u32 %v610, 2147483648
  %v679 = vxor.u32 %v615, 2147483648
  %v680 = vxor.u32 %v618, 2147483648
  %v681 = vmul.f32 %v677, 1.442695
  %v682 = vpow.pop %v681
  %v683 = vmul.f32 %v678, 1.442695
  %v684 = vpow.pop %v683
  %v685 = vmul.f32 %v679, 1.442695
  %v686 = vpow.pop %v685
  %v687 = vmul.f32 %v680, 1.442695
  %v688 = vpow.pop %v687
  %v689 = vadd.f32 %v682, 1.0
  %v690 = vadd.f32 %v684, 1.0
  %v691 = vadd.f32 %v686, 1.0
  %v692 = vadd.f32 %v688, 1.0
  %v693 = vrcp.pop %v689
  %v694 = vmul.f32 1.0, %v693
  %v695 = vrcp.pop %v690
  %v696 = vmul.f32 1.0, %v695
  %v697 = vrcp.pop %v691
  %v698 = vmul.f32 1.0, %v697
  %v699 = vrcp.pop %v692
  %v700 = vmul.f32 1.0, %v699
  %v701 = vtanh.pop %v623
  %v702 = vtanh.pop %v626
  %v703 = vtanh.pop %v631
  %v704 = vtanh.pop %v634
  %v705 = vxor.u32 %v639, 2147483648
  %v706 = vxor.u32 %v642, 2147483648
  %v707 = vxor.u32 %v647, 2147483648
  %v708 = vxor.u32 %v650, 2147483648
  %v709 = vmul.f32 %v705, 1.442695
  %v710 = vpow.pop %v709
  %v711 = vmul.f32 %v706, 1.442695
  %v712 = vpow.pop %v711
  %v713 = vmul.f32 %v707, 1.442695
  %v714 = vpow.pop %v713
  %v715 = vmul.f32 %v708, 1.442695
  %v716 = vpow.pop %v715
  %v717 = vadd.f32 %v710, 1.0
  %v718 = vadd.f32 %v712, 1.0
  %v719 = vadd.f32 %v714, 1.0
  %v720 = vadd.f32 %v716, 1.0
  %v721 = vrcp.pop %v717
  %v722 = vmul.f32 1.0, %v721
  %v723 = vrcp.pop %v718
  %v724 = vmul.f32 1.0, %v723
  %v725 = vrcp.pop %v719
  %v726 = vmul.f32 1.0, %v725
  %v727 = vrcp.pop %v720
  %v728 = vmul.f32 1.0, %v727
  %v729 = vmul.f32 %v694, %v523
  %v730 = vmul.f32 %v696, %v524
  %v731 = vmul.f32 %v698, %v525
  %v732 = vmul.f32 %v700, %v526
  %v733 = vmul.f32 %v670, %v701
  %v734 = vmul.f32 %v672, %v702
  %v735 = vmul.f32 %v674, %v703
  %v736 = vmul.f32 %v676, %v704
  %v737 = vadd.f32 %v729, %v733
  %v738 = vadd.f32 %v730, %v734
  %v739 = vadd.f32 %v731, %v735
  %v740 = vadd.f32 %v732, %v736
  %v741 = vtanh.pop %v737
  %v742 = vtanh.pop %v738
  %v743 = vtanh.pop %v739
  %v744 = vtanh.pop %v740
  %v745 = vmul.f32 %v722, %v741
  %v746 = vmul.f32 %v724, %v742
  %v747 = vmul.f32 %v726, %v743
  %v748 = vmul.f32 %v728, %v744
  %s749 = sadd.s32 0, 12
  %s750 = smul.addr %s749, 4
  %s751 = scalar_lea.vmem %s0, %s750
  %v752 = vld [vmem:[%s751] sm:$0xf]
  %v753 = vld [vmem:[%s751 + $0x4] sm:$0xf]
  %v754 = vld [vmem:[%s751 + $0x8] sm:$0xf]
  %v755 = vld [vmem:[%s751 + $0xc] sm:$0xf]
  %v756 = vpack.c.bf16 %v746, %v745
  %v757 = vpack.c.bf16 %v748, %v747
  %v762 = vunpack.c.l.b16 %v752
  %v763 = vunpack.c.l.b16 %v753
  %v764 = vunpack.c.l.b16 %v754
  %v765 = vunpack.c.l.b16 %v755
  %v766 = vpack.c.b16 %v763, %v762
  %v767 = vpack.c.b16 %v765, %v764
  %770 = vmatprep.subr.bf16.mxu0 0
  %771 = vmatpush1.bf16.msra.mxu0 0
  %772 = vmatprep.subr.bf16.mxu0 0
  %773 = vmatpush1.bf16.msra.mxu0 0
  %774 = vmatprep.subr.bf16.mxu0 0
  %775 = vmatpush1.bf16.msra.mxu0 0
  %776 = vmatprep.subr.bf16.mxu0 0
  %777 = vmatpush1.bf16.msra.mxu0 0
  %778 = vmatprep.subr.bf16.mxu0 0
  %779 = vmatpush1.bf16.msra.mxu0 %v757
  %780 = vmatprep.subr.bf16.mxu0 0
  %781 = vmatpush1.bf16.msra.mxu0 %v756
  %782 = vmatprep.subr.bf16.mxu0 0
  %783 = vmatpush1.bf16.msra.mxu0 %v767
  %784 = vmatprep.subr.bf16.mxu0 0
  %785 = vmatpush1.bf16.msra.mxu0 %v766
  %786 = vmatprep.subr.bf16.mxu0 0
  %787 = vmatpush2.bf16.msra.mxu0 0
  %788 = vmatprep.subr.bf16.mxu0 0
  %789 = vmatpush2.bf16.msra.mxu0 0
  %790 = vmatprep.subr.bf16.mxu0 0
  %791 = vmatpush2.bf16.msra.mxu0 0
  %792 = vmatprep.subr.bf16.mxu0 0
  %793 = vmatpush2.bf16.msra.mxu0 0
  %794 = vmatprep.subr.bf16.mxu0 0
  %795 = vmatpush2.bf16.msra.mxu0 0
  %796 = vmatprep.subr.bf16.mxu0 0
  %797 = vmatpush2.bf16.msra.mxu0 0
  %798 = vmatprep.subr.bf16.mxu0 0
  %799 = vmatpush2.bf16.msra.mxu0 0
  %800 = vmatprep.subr.bf16.mxu0 0
  %801 = vmatpush2.bf16.msra.mxu0 0
  %802 = vmatprep.mubr.bf16.mxu0 0
  %803 = vmatmul.mubr.bf16.gmra.mxu0 %v105
  %v804 = vpop.f32.mrf.mxu0
  %v805 = vadd.f32 %v31, %v804
  %v806 = vpop.f32.mrf.mxu0
  %v807 = vpop.f32.mrf.mxu0
  %v808 = vadd.f32 %v32, %v807
  %v809 = vpop.f32.mrf.mxu0
  %810 = vmatprep.mubr.bf16.mxu0 0
  %811 = vmatmul.mubr.bf16.gmra.mxu0 %v108
  %v812 = vpop.f32.mrf.mxu0
  %v813 = vadd.f32 %v33, %v812
  %v814 = vpop.f32.mrf.mxu0
  %v815 = vpop.f32.mrf.mxu0
  %v816 = vadd.f32 %v34, %v815
  %v817 = vpop.f32.mrf.mxu0
  %818 = vmatprep.mubr.bf16.mxu0 0
  %819 = vmatmul.mubr.bf16.gmra.mxu0 %v111
  %v820 = vpop.f32.mrf.mxu0
  %v821 = vadd.f32 %v35, %v820
  %v822 = vpop.f32.mrf.mxu0
  %v823 = vpop.f32.mrf.mxu0
  %v824 = vadd.f32 %v36, %v823
  %v825 = vpop.f32.mrf.mxu0
  %826 = vmatprep.mubr.bf16.mxu0 0
  %827 = vmatmul.mubr.bf16.gmra.mxu0 %v114
  %v828 = vpop.f32.mrf.mxu0
  %v829 = vadd.f32 %v37, %v828
  %v830 = vpop.f32.mrf.mxu0
  %v831 = vpop.f32.mrf.mxu0
  %v832 = vadd.f32 %v38, %v831
  %v833 = vpop.f32.mrf.mxu0
  %834 = vmatprep.mubr.bf16.mxu0 0
  %835 = vmatmul.mubr.bf16.gmra.mxu0 %v117
  %v836 = vpop.f32.mrf.mxu0
  %v837 = vadd.f32 %v39, %v836
  %v838 = vpop.f32.mrf.mxu0
  %v839 = vpop.f32.mrf.mxu0
  %v840 = vadd.f32 %v40, %v839
  %v841 = vpop.f32.mrf.mxu0
  %842 = vmatprep.mubr.bf16.mxu0 0
  %843 = vmatmul.mubr.bf16.gmra.mxu0 %v120
  %v844 = vpop.f32.mrf.mxu0
  %v845 = vadd.f32 %v41, %v844
  %v846 = vpop.f32.mrf.mxu0
  %v847 = vpop.f32.mrf.mxu0
  %v848 = vadd.f32 %v42, %v847
  %v849 = vpop.f32.mrf.mxu0
  %850 = vmatprep.mubr.bf16.mxu0 0
  %851 = vmatmul.mubr.bf16.gmra.mxu0 %v123
  %v852 = vpop.f32.mrf.mxu0
  %v853 = vadd.f32 %v43, %v852
  %v854 = vpop.f32.mrf.mxu0
  %v855 = vpop.f32.mrf.mxu0
  %v856 = vadd.f32 %v44, %v855
  %v857 = vpop.f32.mrf.mxu0
  %858 = vmatprep.mubr.bf16.mxu0 0
  %859 = vmatmul.mubr.bf16.gmra.mxu0 %v126
  %v860 = vpop.f32.mrf.mxu0
  %v861 = vadd.f32 %v45, %v860
  %v862 = vpop.f32.mrf.mxu0
  %v863 = vpop.f32.mrf.mxu0
  %v864 = vadd.f32 %v46, %v863
  %v865 = vpop.f32.mrf.mxu0
  %866 = vdwg.mxu0
  %v867 = vxor.u32 %v805, 2147483648
  %v868 = vxor.u32 %v808, 2147483648
  %v869 = vxor.u32 %v813, 2147483648
  %v870 = vxor.u32 %v816, 2147483648
  %v871 = vmul.f32 %v867, 1.442695
  %v872 = vpow.pop %v871
  %v873 = vmul.f32 %v868, 1.442695
  %v874 = vpow.pop %v873
  %v875 = vmul.f32 %v869, 1.442695
  %v876 = vpow.pop %v875
  %v877 = vmul.f32 %v870, 1.442695
  %v878 = vpow.pop %v877
  %v879 = vadd.f32 %v872, 1.0
  %v880 = vadd.f32 %v874, 1.0
  %v881 = vadd.f32 %v876, 1.0
  %v882 = vadd.f32 %v878, 1.0
  %v883 = vrcp.pop %v879
  %v884 = vmul.f32 1.0, %v883
  %v885 = vrcp.pop %v880
  %v886 = vmul.f32 1.0, %v885
  %v887 = vrcp.pop %v881
  %v888 = vmul.f32 1.0, %v887
  %v889 = vrcp.pop %v882
  %v890 = vmul.f32 1.0, %v889
  %v891 = vxor.u32 %v821, 2147483648
  %v892 = vxor.u32 %v824, 2147483648
  %v893 = vxor.u32 %v829, 2147483648
  %v894 = vxor.u32 %v832, 2147483648
  %v895 = vmul.f32 %v891, 1.442695
  %v896 = vpow.pop %v895
  %v897 = vmul.f32 %v892, 1.442695
  %v898 = vpow.pop %v897
  %v899 = vmul.f32 %v893, 1.442695
  %v900 = vpow.pop %v899
  %v901 = vmul.f32 %v894, 1.442695
  %v902 = vpow.pop %v901
  %v903 = vadd.f32 %v896, 1.0
  %v904 = vadd.f32 %v898, 1.0
  %v905 = vadd.f32 %v900, 1.0
  %v906 = vadd.f32 %v902, 1.0
  %v907 = vrcp.pop %v903
  %v908 = vmul.f32 1.0, %v907
  %v909 = vrcp.pop %v904
  %v910 = vmul.f32 1.0, %v909
  %v911 = vrcp.pop %v905
  %v912 = vmul.f32 1.0, %v911
  %v913 = vrcp.pop %v906
  %v914 = vmul.f32 1.0, %v913
  %v915 = vtanh.pop %v837
  %v916 = vtanh.pop %v840
  %v917 = vtanh.pop %v845
  %v918 = vtanh.pop %v848
  %v919 = vxor.u32 %v853, 2147483648
  %v920 = vxor.u32 %v856, 2147483648
  %v921 = vxor.u32 %v861, 2147483648
  %v922 = vxor.u32 %v864, 2147483648
  %v923 = vmul.f32 %v919, 1.442695
  %v924 = vpow.pop %v923
  %v925 = vmul.f32 %v920, 1.442695
  %v926 = vpow.pop %v925
  %v927 = vmul.f32 %v921, 1.442695
  %v928 = vpow.pop %v927
  %v929 = vmul.f32 %v922, 1.442695
  %v930 = vpow.pop %v929
  %v931 = vadd.f32 %v924, 1.0
  %v932 = vadd.f32 %v926, 1.0
  %v933 = vadd.f32 %v928, 1.0
  %v934 = vadd.f32 %v930, 1.0
  %v935 = vrcp.pop %v931
  %v936 = vmul.f32 1.0, %v935
  %v937 = vrcp.pop %v932
  %v938 = vmul.f32 1.0, %v937
  %v939 = vrcp.pop %v933
  %v940 = vmul.f32 1.0, %v939
  %v941 = vrcp.pop %v934
  %v942 = vmul.f32 1.0, %v941
  %v943 = vmul.f32 %v908, %v737
  %v944 = vmul.f32 %v910, %v738
  %v945 = vmul.f32 %v912, %v739
  %v946 = vmul.f32 %v914, %v740
  %v947 = vmul.f32 %v884, %v915
  %v948 = vmul.f32 %v886, %v916
  %v949 = vmul.f32 %v888, %v917
  %v950 = vmul.f32 %v890, %v918
  %v951 = vadd.f32 %v943, %v947
  %v952 = vadd.f32 %v944, %v948
  %v953 = vadd.f32 %v945, %v949
  %v954 = vadd.f32 %v946, %v950
  %v955 = vtanh.pop %v951
  %v956 = vtanh.pop %v952
  %v957 = vtanh.pop %v953
  %v958 = vtanh.pop %v954
  %v959 = vmul.f32 %v936, %v955
  %v960 = vmul.f32 %v938, %v956
  %v961 = vmul.f32 %v940, %v957
  %v962 = vmul.f32 %v942, %v958
  %s963 = sadd.s32 0, 16
  %s964 = smul.addr %s963, 4
  %s965 = scalar_lea.vmem %s0, %s964
  %v966 = vld [vmem:[%s965] sm:$0xf]
  %v967 = vld [vmem:[%s965 + $0x4] sm:$0xf]
  %v968 = vld [vmem:[%s965 + $0x8] sm:$0xf]
  %v969 = vld [vmem:[%s965 + $0xc] sm:$0xf]
  %v970 = vpack.c.bf16 %v960, %v959
  %v971 = vpack.c.bf16 %v962, %v961
  %v976 = vunpack.c.l.b16 %v966
  %v977 = vunpack.c.l.b16 %v967
  %v978 = vunpack.c.l.b16 %v968
  %v979 = vunpack.c.l.b16 %v969
  %v980 = vpack.c.b16 %v977, %v976
  %v981 = vpack.c.b16 %v979, %v978
  %984 = vmatprep.subr.bf16.mxu0 0
  %985 = vmatpush1.bf16.msra.mxu0 0
  %986 = vmatprep.subr.bf16.mxu0 0
  %987 = vmatpush1.bf16.msra.mxu0 0
  %988 = vmatprep.subr.bf16.mxu0 0
  %989 = vmatpush1.bf16.msra.mxu0 0
  %990 = vmatprep.subr.bf16.mxu0 0
  %991 = vmatpush1.bf16.msra.mxu0 0
  %992 = vmatprep.subr.bf16.mxu0 0
  %993 = vmatpush1.bf16.msra.mxu0 %v971
  %994 = vmatprep.subr.bf16.mxu0 0
  %995 = vmatpush1.bf16.msra.mxu0 %v970
  %996 = vmatprep.subr.bf16.mxu0 0
  %997 = vmatpush1.bf16.msra.mxu0 %v981
  %998 = vmatprep.subr.bf16.mxu0 0
  %999 = vmatpush1.bf16.msra.mxu0 %v980
  %1000 = vmatprep.subr.bf16.mxu0 0
  %1001 = vmatpush2.bf16.msra.mxu0 0
  %1002 = vmatprep.subr.bf16.mxu0 0
  %1003 = vmatpush2.bf16.msra.mxu0 0
  %1004 = vmatprep.subr.bf16.mxu0 0
  %1005 = vmatpush2.bf16.msra.mxu0 0
  %1006 = vmatprep.subr.bf16.mxu0 0
  %1007 = vmatpush2.bf16.msra.mxu0 0
  %1008 = vmatprep.subr.bf16.mxu0 0
  %1009 = vmatpush2.bf16.msra.mxu0 0
  %1010 = vmatprep.subr.bf16.mxu0 0
  %1011 = vmatpush2.bf16.msra.mxu0 0
  %1012 = vmatprep.subr.bf16.mxu0 0
  %1013 = vmatpush2.bf16.msra.mxu0 0
  %1014 = vmatprep.subr.bf16.mxu0 0
  %1015 = vmatpush2.bf16.msra.mxu0 0
  %1016 = vmatprep.mubr.bf16.mxu0 0
  %1017 = vmatmul.mubr.bf16.gmra.mxu0 %v105
  %v1018 = vpop.f32.mrf.mxu0
  %v1019 = vadd.f32 %v31, %v1018
  %v1020 = vpop.f32.mrf.mxu0
  %v1021 = vpop.f32.mrf.mxu0
  %v1022 = vadd.f32 %v32, %v1021
  %v1023 = vpop.f32.mrf.mxu0
  %1024 = vmatprep.mubr.bf16.mxu0 0
  %1025 = vmatmul.mubr.bf16.gmra.mxu0 %v108
  %v1026 = vpop.f32.mrf.mxu0
  %v1027 = vadd.f32 %v33, %v1026
  %v1028 = vpop.f32.mrf.mxu0
  %v1029 = vpop.f32.mrf.mxu0
  %v1030 = vadd.f32 %v34, %v1029
  %v1031 = vpop.f32.mrf.mxu0
  %1032 = vmatprep.mubr.bf16.mxu0 0
  %1033 = vmatmul.mubr.bf16.gmra.mxu0 %v111
  %v1034 = vpop.f32.mrf.mxu0
  %v1035 = vadd.f32 %v35, %v1034
  %v1036 = vpop.f32.mrf.mxu0
  %v1037 = vpop.f32.mrf.mxu0
  %v1038 = vadd.f32 %v36, %v1037
  %v1039 = vpop.f32.mrf.mxu0
  %1040 = vmatprep.mubr.bf16.mxu0 0
  %1041 = vmatmul.mubr.bf16.gmra.mxu0 %v114
  %v1042 = vpop.f32.mrf.mxu0
  %v1043 = vadd.f32 %v37, %v1042
  %v1044 = vpop.f32.mrf.mxu0
  %v1045 = vpop.f32.mrf.mxu0
  %v1046 = vadd.f32 %v38, %v1045
  %v1047 = vpop.f32.mrf.mxu0
  %1048 = vmatprep.mubr.bf16.mxu0 0
  %1049 = vmatmul.mubr.bf16.gmra.mxu0 %v117
  %v1050 = vpop.f32.mrf.mxu0
  %v1051 = vadd.f32 %v39, %v1050
  %v1052 = vpop.f32.mrf.mxu0
  %v1053 = vpop.f32.mrf.mxu0
  %v1054 = vadd.f32 %v40, %v1053
  %v1055 = vpop.f32.mrf.mxu0
  %1056 = vmatprep.mubr.bf16.mxu0 0
  %1057 = vmatmul.mubr.bf16.gmra.mxu0 %v120
  %v1058 = vpop.f32.mrf.mxu0
  %v1059 = vadd.f32 %v41, %v1058
  %v1060 = vpop.f32.mrf.mxu0
  %v1061 = vpop.f32.mrf.mxu0
  %v1062 = vadd.f32 %v42, %v1061
  %v1063 = vpop.f32.mrf.mxu0
  %1064 = vmatprep.mubr.bf16.mxu0 0
  %1065 = vmatmul.mubr.bf16.gmra.mxu0 %v123
  %v1066 = vpop.f32.mrf.mxu0
  %v1067 = vadd.f32 %v43, %v1066
  %v1068 = vpop.f32.mrf.mxu0
  %v1069 = vpop.f32.mrf.mxu0
  %v1070 = vadd.f32 %v44, %v1069
  %v1071 = vpop.f32.mrf.mxu0
  %1072 = vmatprep.mubr.bf16.mxu0 0
  %1073 = vmatmul.mubr.bf16.gmra.mxu0 %v126
  %v1074 = vpop.f32.mrf.mxu0
  %v1075 = vadd.f32 %v45, %v1074
  %v1076 = vpop.f32.mrf.mxu0
  %v1077 = vpop.f32.mrf.mxu0
  %v1078 = vadd.f32 %v46, %v1077
  %v1079 = vpop.f32.mrf.mxu0
  %1080 = vdwg.mxu0
  %v1081 = vxor.u32 %v1019, 2147483648
  %v1082 = vxor.u32 %v1022, 2147483648
  %v1083 = vxor.u32 %v1027, 2147483648
  %v1084 = vxor.u32 %v1030, 2147483648
  %v1085 = vmul.f32 %v1081, 1.442695
  %v1086 = vpow.pop %v1085
  %v1087 = vmul.f32 %v1082, 1.442695
  %v1088 = vpow.pop %v1087
  %v1089 = vmul.f32 %v1083, 1.442695
  %v1090 = vpow.pop %v1089
  %v1091 = vmul.f32 %v1084, 1.442695
  %v1092 = vpow.pop %v1091
  %v1093 = vadd.f32 %v1086, 1.0
  %v1094 = vadd.f32 %v1088, 1.0
  %v1095 = vadd.f32 %v1090, 1.0
  %v1096 = vadd.f32 %v1092, 1.0
  %v1097 = vrcp.pop %v1093
  %v1098 = vmul.f32 1.0, %v1097
  %v1099 = vrcp.pop %v1094
  %v1100 = vmul.f32 1.0, %v1099
  %v1101 = vrcp.pop %v1095
  %v1102 = vmul.f32 1.0, %v1101
  %v1103 = vrcp.pop %v1096
  %v1104 = vmul.f32 1.0, %v1103
  %v1105 = vxor.u32 %v1035, 2147483648
  %v1106 = vxor.u32 %v1038, 2147483648
  %v1107 = vxor.u32 %v1043, 2147483648
  %v1108 = vxor.u32 %v1046, 2147483648
  %v1109 = vmul.f32 %v1105, 1.442695
  %v1110 = vpow.pop %v1109
  %v1111 = vmul.f32 %v1106, 1.442695
  %v1112 = vpow.pop %v1111
  %v1113 = vmul.f32 %v1107, 1.442695
  %v1114 = vpow.pop %v1113
  %v1115 = vmul.f32 %v1108, 1.442695
  %v1116 = vpow.pop %v1115
  %v1117 = vadd.f32 %v1110, 1.0
  %v1118 = vadd.f32 %v1112, 1.0
  %v1119 = vadd.f32 %v1114, 1.0
  %v1120 = vadd.f32 %v1116, 1.0
  %v1121 = vrcp.pop %v1117
  %v1122 = vmul.f32 1.0, %v1121
  %v1123 = vrcp.pop %v1118
  %v1124 = vmul.f32 1.0, %v1123
  %v1125 = vrcp.pop %v1119
  %v1126 = vmul.f32 1.0, %v1125
  %v1127 = vrcp.pop %v1120
  %v1128 = vmul.f32 1.0, %v1127
  %v1129 = vtanh.pop %v1051
  %v1130 = vtanh.pop %v1054
  %v1131 = vtanh.pop %v1059
  %v1132 = vtanh.pop %v1062
  %v1133 = vxor.u32 %v1067, 2147483648
  %v1134 = vxor.u32 %v1070, 2147483648
  %v1135 = vxor.u32 %v1075, 2147483648
  %v1136 = vxor.u32 %v1078, 2147483648
  %v1137 = vmul.f32 %v1133, 1.442695
  %v1138 = vpow.pop %v1137
  %v1139 = vmul.f32 %v1134, 1.442695
  %v1140 = vpow.pop %v1139
  %v1141 = vmul.f32 %v1135, 1.442695
  %v1142 = vpow.pop %v1141
  %v1143 = vmul.f32 %v1136, 1.442695
  %v1144 = vpow.pop %v1143
  %v1145 = vadd.f32 %v1138, 1.0
  %v1146 = vadd.f32 %v1140, 1.0
  %v1147 = vadd.f32 %v1142, 1.0
  %v1148 = vadd.f32 %v1144, 1.0
  %v1149 = vrcp.pop %v1145
  %v1150 = vmul.f32 1.0, %v1149
  %v1151 = vrcp.pop %v1146
  %v1152 = vmul.f32 1.0, %v1151
  %v1153 = vrcp.pop %v1147
  %v1154 = vmul.f32 1.0, %v1153
  %v1155 = vrcp.pop %v1148
  %v1156 = vmul.f32 1.0, %v1155
  %v1157 = vmul.f32 %v1122, %v951
  %v1158 = vmul.f32 %v1124, %v952
  %v1159 = vmul.f32 %v1126, %v953
  %v1160 = vmul.f32 %v1128, %v954
  %v1161 = vmul.f32 %v1098, %v1129
  %v1162 = vmul.f32 %v1100, %v1130
  %v1163 = vmul.f32 %v1102, %v1131
  %v1164 = vmul.f32 %v1104, %v1132
  %v1165 = vadd.f32 %v1157, %v1161
  %v1166 = vadd.f32 %v1158, %v1162
  %v1167 = vadd.f32 %v1159, %v1163
  %v1168 = vadd.f32 %v1160, %v1164
  %v1169 = vtanh.pop %v1165
  %v1170 = vtanh.pop %v1166
  %v1171 = vtanh.pop %v1167
  %v1172 = vtanh.pop %v1168
  %v1173 = vmul.f32 %v1150, %v1169
  %v1174 = vmul.f32 %v1152, %v1170
  %v1175 = vmul.f32 %v1154, %v1171
  %v1176 = vmul.f32 %v1156, %v1172
  %1177 = vst [vmem:[%s3] sm:$0xff] %v1173
  %1178 = vst [vmem:[%s3 + $0x8] sm:$0xff] %v1174
  %1179 = vst [vmem:[%s3 + $0x10] sm:$0xff] %v1175
  %1180 = vst [vmem:[%s3 + $0x18] sm:$0xff] %v1176
  // Predicated region
  $region14: #{time_distributed_lstm.1} parent=0 // pred_check
    _
  $region15: #{time_distributed_lstm.1} parent=0 // pred_check_branch
    %1182 = sbr.rel (0) target = $region17
  $region16: #{time_distributed_lstm.1} parent=0 // pred_region
    _
  $region17: #{time_distributed_lstm.1} parent=0 // pred_fallthru
    _
  // Predicated region
  $region18: #{time_distributed_lstm.1} parent=0 // pred_check
    _
  $region19: #{time_distributed_lstm.1} parent=0 // pred_check_branch
    %1184 = sbr.rel (0) target = $region21
  $region20: #{time_distributed_lstm.1} parent=0 // pred_region
    _
  $region21: #{time_distributed_lstm.1} parent=0 // pred_fallthru
    _

</llo_original>
